<compile_context>
chip_gen: v5e
topology: v5e:2x2
jax: 0.10.0
libtpu: 0.0.40
codegen_flags: <defaults>
</compile_context>

<pallas_src>
import functools

import jax
import jax.numpy as jnp
from jax.experimental import pallas as pl
from jax.experimental.pallas import tpu as pltpu

LANES = 128
MAX_ROW_BLK = 1024          # 1024 x 128 f32 = 512 KiB per block


def _round_up(x, m):
    return ((x + m - 1) // m) * m


def _reduce_kernel(x_ref, scale_ref, shift_ref, acc_sum, acc_sq, *, n_valid):
    """Pass 1: vector-accumulate sum / sum-of-squares; finalize scale & shift."""
    i = pl.program_id(0)
    rb, lanes = x_ref.shape
    blk_elems = rb * lanes
    blk_start = i * blk_elems

    @pl.when(i == 0)
    def _():
        acc_sum[...] = jnp.zeros_like(acc_sum)
        acc_sq[...] = jnp.zeros_like(acc_sq)

    x = x_ref[...].astype(jnp.float32)

    # Fast path: block fully inside the valid range -> plain VPU adds.
    @pl.when(blk_start + blk_elems <= n_valid)
    def _():
        acc_sum[...] += x
        acc_sq[...] += x * x

    # Slow path: (partial) last block -> mask out-of-range / padded elements.
    @pl.when(blk_start + blk_elems > n_valid)
    def _():
        row = jax.lax.broadcasted_iota(jnp.int32, (rb, lanes), 0)
        col = jax.lax.broadcasted_iota(jnp.int32, (rb, lanes), 1)
        flat_idx = blk_start + row * lanes + col
        xm = jnp.where(flat_idx < n_valid, x, 0.0)
        acc_sum[...] += xm
        acc_sq[...] += xm * xm

    @pl.when(i == pl.num_programs(0) - 1)
    def _():
        inv_n = jnp.float32(1.0 / n_valid)
        mean = jnp.sum(acc_sum[...]) * inv_n
        var = jnp.sum(acc_sq[...]) * inv_n - mean * mean   # population variance
        var = jnp.maximum(var, 0.0)                        # cancellation guard
        std = jnp.sqrt(var)
        scale = 1.0 / std                                  # exact scalar reciprocal
        scale_ref[0, 0] = scale
        shift_ref[0, 0] = -mean * scale


def _normalize_kernel(scale_ref, shift_ref, x_ref, o_ref):
    """Pass 2: pure FMA, o = x * scale + shift (== (x - mean) / std)."""
    s = scale_ref[0, 0]
    t = shift_ref[0, 0]
    o_ref[...] = (x_ref[...].astype(jnp.float32) * s + t).astype(o_ref.dtype)


def standard_scaler(x):
    orig_shape = x.shape
    n_elems = x.size

    flat = x.reshape(-1)                 # free (contiguous), keeps original dtype
    pad = (-n_elems) % LANES
    if pad:                              # only for non-lane-aligned element counts
        flat = jnp.pad(flat, (0, pad))
    rows = flat.shape[0] // LANES
    x2d = flat.reshape(rows, LANES)

    row_blk = min(MAX_ROW_BLK, _round_up(rows, 8))
    n_tiles = pl.cdiv(rows, row_blk)
    grid = (n_tiles,)

    block_spec = pl.BlockSpec((row_blk, LANES), lambda i: (i, 0))
    smem_spec = pl.BlockSpec(memory_space=pltpu.MemorySpace.SMEM)

    # Pass 1: global reduction -> scale = 1/std, shift = -mean/std  (SMEM scalars).
    scale_arr, shift_arr = pl.pallas_call(
        functools.partial(_reduce_kernel, n_valid=n_elems),
        out_shape=(
            jax.ShapeDtypeStruct((1, 1), jnp.float32),
            jax.ShapeDtypeStruct((1, 1), jnp.float32),
        ),
        grid=grid,
        in_specs=[block_spec],
        out_specs=(smem_spec, smem_spec),
        scratch_shapes=[
            pltpu.VMEM((row_blk, LANES), jnp.float32),
            pltpu.VMEM((row_blk, LANES), jnp.float32),
        ],
        compiler_params=pltpu.CompilerParams(dimension_semantics=("arbitrary",)),
    )(x2d)

    # Pass 2: elementwise x*scale + shift.
    out2d = pl.pallas_call(
        _normalize_kernel,
        out_shape=jax.ShapeDtypeStruct((rows, LANES), jnp.float32),
        grid=grid,
        in_specs=[smem_spec, smem_spec, block_spec],
        out_specs=pl.BlockSpec((row_blk, LANES), lambda i: (i, 0)),
        compiler_params=pltpu.CompilerParams(dimension_semantics=("parallel",)),
    )(scale_arr, shift_arr, x2d)

    out = out2d.reshape(-1)
    if pad:
        out = out[:n_elems]
    return out.reshape(orig_shape)


if __name__ == "__main__":
    key = jax.random.PRNGKey(0)
    x = jax.random.normal(key, (2, 4, 16, 16), dtype=jnp.float32) * 3.0 + 1.5

    out = jax.block_until_ready(standard_scaler(x))

    # pure-JAX reference (population std, global reduction)
    xf = x.astype(jnp.float32)
    mean = jnp.mean(xf)
    std = jnp.sqrt(jnp.mean((xf - mean) ** 2))
    ref = (xf - mean) / std

    assert out.shape == x.shape and out.dtype == jnp.float32
    assert jnp.allclose(out, ref, atol=1e-5, rtol=1e-5), "mismatch vs reference"
    print("KERNEL_OK")
</pallas_src>

<mosaic_0001>
module attributes {stable_mosaic.version = 11 : i64} {
  func.func @_reduce_kernel(%arg0: i32, %arg1: memref<16x128xf32, #tpu.memory_space<vmem>>, %arg2: memref<1x1xf32, #tpu.memory_space<smem>>, %arg3: memref<1x1xf32, #tpu.memory_space<smem>>, %arg4: memref<16x128xf32, #tpu.memory_space<vmem>>, %arg5: memref<16x128xf32, #tpu.memory_space<vmem>>) attributes {dimension_semantics = [#tpu.dimension_semantics<arbitrary>], iteration_bounds = array<i64: 1>, scalar_prefetch = 0 : i64, scratch_operands = 2 : i64, tpu.core_type = #tpu.core_type<tc>, window_params = [{transform_indices = @transform_0, window_bounds = array<i64: 16, 128>}, {transform_indices = @transform_1, window_bounds = array<i64: 1, 1>}, {transform_indices = @transform_2, window_bounds = array<i64: 1, 1>}]} {
    %c2048_i32 = arith.constant 2048 : i32
    %0 = arith.muli %arg0, %c2048_i32 : i32
    %c0_i32 = arith.constant 0 : i32
    %1 = arith.cmpi eq, %arg0, %c0_i32 : i32
    %2 = arith.extui %1 : i1 to i32
    %c0_i32_0 = arith.constant 0 : i32
    %3 = arith.cmpi ne, %2, %c0_i32_0 : i32
    scf.if %3 {
      %cst = arith.constant 0.000000e+00 : f32
      %16 = vector.broadcast %cst : f32 to vector<16x128xf32>
      %c0_10 = arith.constant 0 : index
      %c0_11 = arith.constant 0 : index
      %17 = vector.load %arg4[%c0_10, %c0_11] : memref<16x128xf32, #tpu.memory_space<vmem>>, vector<16x128xf32>
      tpu.vector_store %arg4[%c0_10, %c0_11], %16 {strides = array<i32>} : memref<16x128xf32, #tpu.memory_space<vmem>>, vector<16x128xf32>,
      %cst_12 = arith.constant 0.000000e+00 : f32
      %18 = vector.broadcast %cst_12 : f32 to vector<16x128xf32>
      %c0_13 = arith.constant 0 : index
      %c0_14 = arith.constant 0 : index
      %19 = vector.load %arg5[%c0_13, %c0_14] : memref<16x128xf32, #tpu.memory_space<vmem>>, vector<16x128xf32>
      tpu.vector_store %arg5[%c0_13, %c0_14], %18 {strides = array<i32>} : memref<16x128xf32, #tpu.memory_space<vmem>>, vector<16x128xf32>,
    } else {
    }
    %c0 = arith.constant 0 : index
    %c0_1 = arith.constant 0 : index
    %4 = vector.load %arg1[%c0, %c0_1] : memref<16x128xf32, #tpu.memory_space<vmem>>, vector<16x128xf32>
    %c2048_i32_2 = arith.constant 2048 : i32
    %5 = arith.addi %0, %c2048_i32_2 : i32
    %c2048_i32_3 = arith.constant 2048 : i32
    %6 = arith.cmpi sle, %5, %c2048_i32_3 : i32
    %7 = arith.extui %6 : i1 to i32
    %c0_i32_4 = arith.constant 0 : i32
    %8 = arith.cmpi ne, %7, %c0_i32_4 : i32
    scf.if %8 {
      %c0_10 = arith.constant 0 : index
      %c0_11 = arith.constant 0 : index
      %16 = vector.load %arg4[%c0_10, %c0_11] : memref<16x128xf32, #tpu.memory_space<vmem>>, vector<16x128xf32>
      %17 = arith.addf %16, %4 : vector<16x128xf32>
      %c0_12 = arith.constant 0 : index
      %c0_13 = arith.constant 0 : index
      %18 = vector.load %arg4[%c0_12, %c0_13] : memref<16x128xf32, #tpu.memory_space<vmem>>, vector<16x128xf32>
      tpu.vector_store %arg4[%c0_12, %c0_13], %17 {strides = array<i32>} : memref<16x128xf32, #tpu.memory_space<vmem>>, vector<16x128xf32>,
      %c0_14 = arith.constant 0 : index
      %c0_15 = arith.constant 0 : index
      %19 = vector.load %arg5[%c0_14, %c0_15] : memref<16x128xf32, #tpu.memory_space<vmem>>, vector<16x128xf32>
      %20 = arith.mulf %4, %4 : vector<16x128xf32>
      %21 = arith.addf %19, %20 : vector<16x128xf32>
      %c0_16 = arith.constant 0 : index
      %c0_17 = arith.constant 0 : index
      %22 = vector.load %arg5[%c0_16, %c0_17] : memref<16x128xf32, #tpu.memory_space<vmem>>, vector<16x128xf32>
      tpu.vector_store %arg5[%c0_16, %c0_17], %21 {strides = array<i32>} : memref<16x128xf32, #tpu.memory_space<vmem>>, vector<16x128xf32>,
    } else {
    }
    %c2048_i32_5 = arith.constant 2048 : i32
    %9 = arith.addi %0, %c2048_i32_5 : i32
    %c2048_i32_6 = arith.constant 2048 : i32
    %10 = arith.cmpi sgt, %9, %c2048_i32_6 : i32
    %11 = arith.extui %10 : i1 to i32
    %c0_i32_7 = arith.constant 0 : i32
    %12 = arith.cmpi ne, %11, %c0_i32_7 : i32
    scf.if %12 {
      %16 = tpu.iota {dimensions = array<i32: 0>} : vector<16x128xi32>
      %17 = tpu.iota {dimensions = array<i32: 1>} : vector<16x128xi32>
      %c128_i32 = arith.constant 128 : i32
      %18 = vector.broadcast %c128_i32 : i32 to vector<16x128xi32>
      %19 = arith.muli %16, %18 : vector<16x128xi32>
      %20 = vector.broadcast %0 : i32 to vector<16x128xi32>
      %21 = arith.addi %20, %19 : vector<16x128xi32>
      %22 = arith.addi %21, %17 : vector<16x128xi32>
      %c2048_i32_10 = arith.constant 2048 : i32
      %23 = vector.broadcast %c2048_i32_10 : i32 to vector<16x128xi32>
      %24 = arith.cmpi slt, %22, %23 : vector<16x128xi32>
      %cst = arith.constant 0.000000e+00 : f32
      %25 = vector.broadcast %cst : f32 to vector<16x128xf32>
      %26 = arith.select %24, %4, %25 : vector<16x128xi1>, vector<16x128xf32>
      %c0_11 = arith.constant 0 : index
      %c0_12 = arith.constant 0 : index
      %27 = vector.load %arg4[%c0_11, %c0_12] : memref<16x128xf32, #tpu.memory_space<vmem>>, vector<16x128xf32>
      %28 = arith.addf %27, %26 : vector<16x128xf32>
      %c0_13 = arith.constant 0 : index
      %c0_14 = arith.constant 0 : index
      %29 = vector.load %arg4[%c0_13, %c0_14] : memref<16x128xf32, #tpu.memory_space<vmem>>, vector<16x128xf32>
      tpu.vector_store %arg4[%c0_13, %c0_14], %28 {strides = array<i32>} : memref<16x128xf32, #tpu.memory_space<vmem>>, vector<16x128xf32>,
      %c0_15 = arith.constant 0 : index
      %c0_16 = arith.constant 0 : index
      %30 = vector.load %arg5[%c0_15, %c0_16] : memref<16x128xf32, #tpu.memory_space<vmem>>, vector<16x128xf32>
      %31 = arith.mulf %26, %26 : vector<16x128xf32>
      %32 = arith.addf %30, %31 : vector<16x128xf32>
      %c0_17 = arith.constant 0 : index
      %c0_18 = arith.constant 0 : index
      %33 = vector.load %arg5[%c0_17, %c0_18] : memref<16x128xf32, #tpu.memory_space<vmem>>, vector<16x128xf32>
      tpu.vector_store %arg5[%c0_17, %c0_18], %32 {strides = array<i32>} : memref<16x128xf32, #tpu.memory_space<vmem>>, vector<16x128xf32>,
    } else {
    }
    %c0_i32_8 = arith.constant 0 : i32
    %13 = arith.cmpi eq, %arg0, %c0_i32_8 : i32
    %14 = arith.extui %13 : i1 to i32
    %c0_i32_9 = arith.constant 0 : i32
    %15 = arith.cmpi ne, %14, %c0_i32_9 : i32
    scf.if %15 {
      %c0_10 = arith.constant 0 : index
      %c0_11 = arith.constant 0 : index
      %16 = vector.load %arg4[%c0_10, %c0_11] : memref<16x128xf32, #tpu.memory_space<vmem>>, vector<16x128xf32>
      %17 = vector.shape_cast %16 : vector<16x128xf32> to vector<1x16x128xf32>
      %cst = arith.constant dense<0.000000e+00> : vector<1xf32>
      %18 = vector.multi_reduction <add>, %17, %cst [1, 2] : vector<1x16x128xf32> to vector<1xf32>
      %19 = vector.shape_cast %18 : vector<1xf32> to vector<1x1x1xf32>
      %20 = vector.extract %19[0, 0, 0] : f32 from vector<1x1x1xf32>
      %cst_12 = arith.constant 4.8828125E-4 : f32
      %21 = arith.mulf %20, %cst_12 : f32
      %c0_13 = arith.constant 0 : index
      %c0_14 = arith.constant 0 : index
      %22 = vector.load %arg5[%c0_13, %c0_14] : memref<16x128xf32, #tpu.memory_space<vmem>>, vector<16x128xf32>
      %23 = vector.shape_cast %22 : vector<16x128xf32> to vector<1x16x128xf32>
      %cst_15 = arith.constant dense<0.000000e+00> : vector<1xf32>
      %24 = vector.multi_reduction <add>, %23, %cst_15 [1, 2] : vector<1x16x128xf32> to vector<1xf32>
      %25 = vector.shape_cast %24 : vector<1xf32> to vector<1x1x1xf32>
      %26 = vector.extract %25[0, 0, 0] : f32 from vector<1x1x1xf32>
      %cst_16 = arith.constant 4.8828125E-4 : f32
      %27 = arith.mulf %26, %cst_16 : f32
      %28 = arith.mulf %21, %21 : f32
      %29 = arith.subf %27, %28 : f32
      %cst_17 = arith.constant 0.000000e+00 : f32
      %30 = arith.maximumf %29, %cst_17 : f32
      %31 = math.sqrt %30 : f32
      %cst_18 = arith.constant 1.000000e+00 : f32
      %32 = arith.divf %cst_18, %31 : f32
      %c0_19 = arith.constant 0 : index
      %c0_20 = arith.constant 0 : index
      %33 = memref.load %arg2[%c0_19, %c0_20] : memref<1x1xf32, #tpu.memory_space<smem>>
      memref.store %32, %arg2[%c0_19, %c0_20] : memref<1x1xf32, #tpu.memory_space<smem>>
      %cst_21 = arith.constant 0.000000e+00 : f32
      %34 = arith.subf %cst_21, %21 : f32
      %35 = arith.mulf %34, %32 : f32
      %c0_22 = arith.constant 0 : index
      %c0_23 = arith.constant 0 : index
      %36 = memref.load %arg3[%c0_22, %c0_23] : memref<1x1xf32, #tpu.memory_space<smem>>
      memref.store %35, %arg3[%c0_22, %c0_23] : memref<1x1xf32, #tpu.memory_space<smem>>
    } else {
    }
    return
  }
  func.func @transform_0(%arg0: i32) -> (i32, i32) {
    %c0_i32 = arith.constant 0 : i32
    %c0_i32_0 = arith.constant 0 : i32
    return %arg0, %c0_i32 : i32, i32
  }
  func.func @transform_1(%arg0: i32) -> (i32, i32) {
    %c0_i32 = arith.constant 0 : i32
    %c0_i32_0 = arith.constant 0 : i32
    %c0_i32_1 = arith.constant 0 : i32
    return %c0_i32, %c0_i32_0 : i32, i32
  }
  func.func @transform_2(%arg0: i32) -> (i32, i32) {
    %c0_i32 = arith.constant 0 : i32
    %c0_i32_0 = arith.constant 0 : i32
    %c0_i32_1 = arith.constant 0 : i32
    return %c0_i32, %c0_i32_0 : i32, i32
  }
}

</mosaic_0001>

<llo_original>
// kernel: tpu_custom_call.1
$region0: #{tpu_custom_call.1}
  #allocation0 [shape = 'u32[]', space=smem, size = 0x4, offset = 0x4, fixed_abs, tag = 'smem constant byte address 0x4 - core index']
  #allocation1 [shape = 'u32[72,128]{1,0:T(1,128)}', space=vmem, size = 0x9000, scoped, tag = 'internal scratch']
  #allocation2 [shape = 'f32[16,128]{1,0:T(8,128)}', space=vmem, size = 0x2000, scoped, tag = 'scratch operand']
  #allocation3 [shape = 'f32[16,128]{1,0:T(8,128)}', space=vmem, size = 0x2000, scoped, tag = 'scratch operand']
  %s0 = inlined_call_operand.hbm [shape: f32[16,128], index: 0, kind: input, shape index: {}]
  %s1 = inlined_call_operand.hbm [shape: f32[1,1], index: 1, kind: output, shape index: {0}]
  %s2 = inlined_call_operand.hbm [shape: f32[1,1], index: 2, kind: output, shape index: {1}]
  %3 = xla_tuple %s1, %s2
  %s4 = sld [smem:[#allocation0]]
  $region42: #{tpu_custom_call.1} parent=0
    _
  %s6 = ssub.s32 1, %s4
  %s7 = scalar_select 0, %s6, %s4
  $region1: #{tpu_custom_call.1} parent=0
    #allocation4 [shape = 'u8[8192]{0}', space=vmem, size = 0x2000, scoped, tag = 'input window, operand 0, single buffered']
    #allocation5 [shape = 's32[1]{0}', space=sflag, size = 0x4, scoped, tag = 'scoped memory for tpu_custom_call.1']
    #allocation6 [shape = 's32[1]{0}', space=sflag, size = 0x4, scoped, tag = 'scoped memory for tpu_custom_call.1']
    #allocation7 [shape = 'u8[512]{0}', space=smem, size = 0x200, scoped, tag = 'output window, operand 0, single buffered']
    #allocation8 [shape = 'u8[512]{0}', space=smem, size = 0x200, scoped, tag = 'output window, operand 1, single buffered']
    #allocation9 [shape = 's32[1]{0}', space=sflag, size = 0x4, scoped, tag = 'scoped memory for tpu_custom_call.1']
    %8 = vsyncpa [#allocation5], 0
    %9 = vsyncpa [#allocation6], 0
    %10 = vsyncpa [#allocation9], 0
    // Predicated region
    $region2: #{tpu_custom_call.1} parent=1 // pred_check
      _
    $region3: #{tpu_custom_call.1} parent=1 // pred_check_branch
      %12 = sbr.rel (0) target = $region5
    $region4: #{tpu_custom_call.1} parent=1 // pred_region
      %14 = vsyncadd [#allocation5], 0
      %s15 = sshll.u32 %s0, 4
      %s16 = int_to_ptr.hbm [resolvable:$true] %s15
      %s17 = sshll.u32 [#allocation4], 4
      %s18 = int_to_ptr.vmem [resolvable:$true] %s17
      %23 = dma.hbm_to_vmem [thread:$0]  %s16, 256, %s18, [#allocation5], 128, 128, 8
    $region5: #{tpu_custom_call.1} parent=1 // pred_fallthru
      _
    // Predicated region
    $region6: #{tpu_custom_call.1} parent=1 // pred_check
      _
    $region7: #{tpu_custom_call.1} parent=1 // pred_check_branch
      %25 = sbr.rel (0) target = $region9
    $region8: #{tpu_custom_call.1} parent=1 // pred_region
      %27 = dma.done [#allocation5], 256
    $region9: #{tpu_custom_call.1} parent=1 // pred_fallthru
      _
    %s28 = smul.u32 0, 2048
    %p29 = scmp.eq.s32.totalorder 0, 0
    // Predicated region
    $region10: #{tpu_custom_call.1} parent=1 // pred_check
      %p30 = pneg %p29
    $region11: #{tpu_custom_call.1} parent=1 // pred_check_branch
      %32 = sbr.rel (%p30) target = $region13
    $region12: #{tpu_custom_call.1} parent=1 // pred_region
      %33 = vst [vmem:[#allocation2] sm:$0xff] 0.0
      %34 = vst [vmem:[#allocation2 + $0x8] sm:$0xff] 0.0
      %35 = vst [vmem:[#allocation3] sm:$0xff] 0.0
      %36 = vst [vmem:[#allocation3 + $0x8] sm:$0xff] 0.0
    $region13: #{tpu_custom_call.1} parent=1 // pred_fallthru
      _
    %v37 = vld [vmem:[#allocation4] sm:$0xff]
    %v38 = vld [vmem:[#allocation4 + $0x8] sm:$0xff]
    %s39 = sadd.s32 %s28, 2048
    %p40 = scmp.le.s32.totalorder %s39, 2048
    // Predicated region
    $region14: #{tpu_custom_call.1} parent=1 // pred_check
      %p41 = pneg %p40
    $region15: #{tpu_custom_call.1} parent=1 // pred_check_branch
      %43 = sbr.rel (%p41) target = $region17
    $region16: #{tpu_custom_call.1} parent=1 // pred_region
      %v44 = vld [vmem:[#allocation2] sm:$0xff]
      %v45 = vld [vmem:[#allocation2 + $0x8] sm:$0xff]
      %v46 = vadd.f32 %v44, %v37
      %v47 = vadd.f32 %v45, %v38
      %48 = vst [vmem:[#allocation2] sm:$0xff] %v46
      %49 = vst [vmem:[#allocation2 + $0x8] sm:$0xff] %v47
      %v50 = vld [vmem:[#allocation3] sm:$0xff]
      %v51 = vld [vmem:[#allocation3 + $0x8] sm:$0xff]
      %v52 = vmul.f32 %v37, %v37
      %v53 = vmul.f32 %v38, %v38
      %v54 = vadd.f32 %v50, %v52
      %v55 = vadd.f32 %v51, %v53
      %56 = vst [vmem:[#allocation3] sm:$0xff] %v54
      %57 = vst [vmem:[#allocation3 + $0x8] sm:$0xff] %v55
    $region17: #{tpu_custom_call.1} parent=1 // pred_fallthru
      _
    %p58 = scmp.gt.s32.totalorder %s39, 2048
    // Predicated region
    $region18: #{tpu_custom_call.1} parent=1 // pred_check
      %p59 = pneg %p58
    $region19: #{tpu_custom_call.1} parent=1 // pred_check_branch
      %61 = sbr.rel (%p59) target = $region21
    $region20: #{tpu_custom_call.1} parent=1 // pred_region
      %v62 = vlaneseq
      %v63 = vshrl.u32 %v62, 7
      %v64 = vadd.s32 %v63, 8
      %v65 = vlaneseq
      %v66 = vand.u32 %v65, 127
      %v67 = vmul.u32 %v63, 128
      %v68 = vmul.u32 %v64, 128
      %v69 = vstv %s28
      %v70 = vadd.s32 %v69, %v67
      %v71 = vadd.s32 %v69, %v68
      %v72 = vadd.s32 %v70, %v66
      %v73 = vadd.s32 %v71, %v66
      %vm74 = vcmp.lt.s32.totalorder %v72, 2048
      %vm75 = vcmp.lt.s32.totalorder %v73, 2048
      %v76 = vsel %vm74, %v37, 0.0
      %v77 = vsel %vm75, %v38, 0.0
      %v78 = vld [vmem:[#allocation2] sm:$0xff]
      %v79 = vld [vmem:[#allocation2 + $0x8] sm:$0xff]
      %v80 = vadd.f32 %v78, %v76
      %v81 = vadd.f32 %v79, %v77
      %82 = vst [vmem:[#allocation2] sm:$0xff] %v80
      %83 = vst [vmem:[#allocation2 + $0x8] sm:$0xff] %v81
      %v84 = vld [vmem:[#allocation3] sm:$0xff]
      %v85 = vld [vmem:[#allocation3 + $0x8] sm:$0xff]
      %v86 = vmul.f32 %v76, %v76
      %v87 = vmul.f32 %v77, %v77
      %v88 = vadd.f32 %v84, %v86
      %v89 = vadd.f32 %v85, %v87
      %90 = vst [vmem:[#allocation3] sm:$0xff] %v88
      %91 = vst [vmem:[#allocation3 + $0x8] sm:$0xff] %v89
    $region21: #{tpu_custom_call.1} parent=1 // pred_fallthru
      _
    // Predicated region
    $region22: #{tpu_custom_call.1} parent=1 // pred_check
      %p92 = pneg %p29
    $region23: #{tpu_custom_call.1} parent=1 // pred_check_branch
      %94 = sbr.rel (%p92) target = $region25
    $region24: #{tpu_custom_call.1} parent=1 // pred_region
      %v95 = vld [vmem:[#allocation2] sm:$0xff]
      %v96 = vld [vmem:[#allocation2 + $0x8] sm:$0xff]
      %v97 = vadd.f32 %v95, %v96
      %98 = vadd.xlane.f32.xlu0 %v97
      %v99 = vpop.xlane.xlu0 %98
      %v100 = vrot.slane %v99, 4
      %v101 = vadd.f32 %v99, %v100
      %v102 = vrot.slane %v101, 2
      %v103 = vadd.f32 %v101, %v102
      %v104 = vrot.slane %v103, 1
      %v105 = vadd.f32 %v103, %v104
      %s106 = vtos %v105
      %s107 = smul.f32 %s106, 0.00048828125
      %v108 = vld [vmem:[#allocation3] sm:$0xff]
      %v109 = vld [vmem:[#allocation3 + $0x8] sm:$0xff]
      %v110 = vadd.f32 %v108, %v109
      %111 = vadd.xlane.f32.xlu0 %v110
      %v112 = vpop.xlane.xlu0 %111
      %v113 = vrot.slane %v112, 4
      %v114 = vadd.f32 %v112, %v113
      %v115 = vrot.slane %v114, 2
      %v116 = vadd.f32 %v114, %v115
      %v117 = vrot.slane %v116, 1
      %v118 = vadd.f32 %v116, %v117
      %s119 = vtos %v118
      %s120 = smul.f32 %s119, 0.00048828125
      %s121 = smul.f32 %s107, %s107
      %s122 = ssub.f32 %s120, %s121
      %s123 = smax.f32 %s122, 0.0
      %v124 = vstv %s123
      %v125 = vrsqrt.pop %v124
      %v126 = vmul.f32 %v125, %v124
      %v127 = vmul.f32 %v126, %v125
      %v128 = vmul.f32 0.5, %v127
      %v129 = vsub.f32 1.5, %v128
      %v130 = vmul.f32 %v125, %v129
      %v131 = vmul.f32 %v124, %v130
      %vm132 = vcmp.eq.f32.partialorder %v124, inf
      %v133 = vsel %vm132, %v124, %v131
      %vm134 = vcmp.eq.f32.partialorder %v124, 0.0
      %v135 = vand.u32 %v124, 2147483648
      %v136 = vsel %vm134, %v135, %v133
      %s137 = vtos %v136
      %v138 = vstv %s137
      %v139 = vrcp.pop %v138
      %v140 = vmul.f32 %v138, %v139
      %v141 = vsub.f32 1.0, %v140
      %v142 = vmul.f32 %v139, %v141
      %v143 = vadd.f32 %v139, %v142
      %vm144 = vweird.f32 %v138
      %vm145 = vweird.f32 %v139
      %vm146 = vmor %vm144, %vm145
      %v147 = vsel %vm146, %v139, %v143
      %v148 = vand.u32 2147483647, %v138
      %vm149 = vcmp.eq.f32.partialorder %v148, 8.507059e+37
      %v150 = vand.u32 %v138, 2147483648
      %v151 = vor.u32 1.1754944e-38, %v150
      %v152 = vsel %vm149, %v151, %v147
      %s153 = vtos %v152
      %s154 = scalar_lea.smem [#allocation7], 0
      %155 = sst [smem:[%s154]] %s153
      %s156 = ssub.f32 0.0, %s107
      %s157 = smul.f32 %s156, %s153
      %s158 = scalar_lea.smem [#allocation8], 0
      %159 = sst [smem:[%s158]] %s157
    $region25: #{tpu_custom_call.1} parent=1 // pred_fallthru
      _
    // Predicated region
    $region26: #{tpu_custom_call.1} parent=1 // pred_check
      _
    $region27: #{tpu_custom_call.1} parent=1 // pred_check_branch
      %161 = sbr.rel (0) target = $region29
    $region28: #{tpu_custom_call.1} parent=1 // pred_region
      %163 = vsyncadd [#allocation6], 0
      %s165 = sshll.u32 %s1, 4
      %s166 = int_to_ptr.hbm [resolvable:$true] %s165
      %168 = dma.smem_to_hbm [#allocation7], 16, %s166, [#allocation6]
    $region29: #{tpu_custom_call.1} parent=1 // pred_fallthru
      _
    // Predicated region
    $region30: #{tpu_custom_call.1} parent=1 // pred_check
      _
    $region31: #{tpu_custom_call.1} parent=1 // pred_check_branch
      %170 = sbr.rel (0) target = $region33
    $region32: #{tpu_custom_call.1} parent=1 // pred_region
      %172 = vsyncadd [#allocation9], 0
      %s174 = sshll.u32 %s2, 4
      %s175 = int_to_ptr.hbm [resolvable:$true] %s174
      %177 = dma.smem_to_hbm [#allocation8], 16, %s175, [#allocation9]
    $region33: #{tpu_custom_call.1} parent=1 // pred_fallthru
      _
    // Predicated region
    $region34: #{tpu_custom_call.1} parent=1 // pred_check
      _
    $region35: #{tpu_custom_call.1} parent=1 // pred_check_branch
      %179 = sbr.rel (0) target = $region37
    $region36: #{tpu_custom_call.1} parent=1 // pred_region
      %181 = dma.done [#allocation6], 16
    $region37: #{tpu_custom_call.1} parent=1 // pred_fallthru
      _
    // Predicated region
    $region38: #{tpu_custom_call.1} parent=1 // pred_check
      _
    $region39: #{tpu_custom_call.1} parent=1 // pred_check_branch
      %183 = sbr.rel (0) target = $region41
    $region40: #{tpu_custom_call.1} parent=1 // pred_region
      %185 = dma.done [#allocation9], 16
    $region41: #{tpu_custom_call.1} parent=1 // pred_fallthru
      _
    %186 = sfence
    %187 = vsyncpa [#allocation5], 1
    %188 = vsyncpa [#allocation6], 1
    %189 = vsyncpa [#allocation9], 1

</llo_original>
